<compile_context>
chip_gen: v7x
topology: tpu7x:2x2x1
jax: 0.10.0
libtpu: 0.0.40
codegen_flags: <defaults>
</compile_context>

<pallas_src>
import functools

import jax
import jax.numpy as jnp
from jax.experimental import pallas as pl
from jax.experimental.pallas import tpu as pltpu


def _round_up(x: int, m: int) -> int:
    return ((x + m - 1) // m) * m


def _tile_divisors(total: int, unit: int):
    """Divisors of `total` that are multiples of `unit`, descending."""
    q = total // unit
    return [d * unit for d in range(q, 0, -1) if q % d == 0]


def _largest_tile(total: int, unit: int, cap: int) -> int:
    """Largest divisor of `total` that is a multiple of `unit` and <= cap."""
    cap = max(unit, min(cap, total))
    for d in _tile_divisors(total, unit):
        if d <= cap:
            return d
    return unit


def _vmem_budget_bytes() -> int:
    """~75% of the physical per-core VMEM (headroom for Mosaic scratch)."""
    cap = 64 * 1024 * 1024  # v7x-safe fallback
    try:
        info = pltpu.get_tpu_info()
        cap = int(getattr(info, "vmem_capacity_bytes", cap))
    except Exception:
        pass
    return (cap // 4) * 3


def _select_tiles(Mp, Np, Kp, in_bytes, sublane, budget):
    """Pick (tm, tn, tk) dividing (Mp, Np, Kp) under the VMEM budget."""

    def fp(tm, tn, tk):
        # Double-buffered x and weight tiles + bias + f32 output block.
        return (2 * tm * tk * in_bytes
                + 2 * tk * tn * in_bytes
                + 2 * tn * 4
                + 2 * tm * tn * 4)

    # Lane-dense N tile, bounded so the f32 output tile stays modest.
    tn = _largest_tile(Np, 128, min(Np, 512))

    # Prefer whole-K blocks: one K step per (i, j) tile, no accumulation loop.
    tk = 128
    for cand in _tile_divisors(Kp, 128):
        if fp(sublane, tn, cand) <= budget:
            tk = cand
            break

    # Grow tm toward Mp (tm == Mp => weight streamed from HBM exactly once).
    per_row = 2 * tk * in_bytes + 2 * tn * 4
    fixed = 2 * tk * tn * in_bytes + 2 * tn * 4
    tm_cap = max(sublane, (budget - fixed) // per_row)
    tm = _largest_tile(Mp, sublane, tm_cap)

    # If a single tile covers everything, split M so both TensorCores on a
    # v7x chip get a 'parallel' block (one extra grid step on 1-TC parts).
    if Mp // tm == 1 and Np // tn == 1 and Mp >= 2 * sublane:
        tm = _largest_tile(Mp, sublane, Mp // 2)

    return tm, tn, tk


def linear_kernel(x_ref, w_ref, b_ref, o_ref):
    """x_ref: [tm, tk], w_ref: [tk, tn], b_ref: [1, tn], o_ref: [tm, tn] f32.

    The output block index (i, j) is constant across the K grid axis, so the
    o_ref tile is resident in VMEM and used directly as the accumulator.
    """
    k = pl.program_id(2)
    partial = jnp.dot(x_ref[...], w_ref[...], preferred_element_type=jnp.float32)

    @pl.when(k == 0)
    def _():
        o_ref[...] = b_ref[...] + partial

    @pl.when(k != 0)
    def _():
        o_ref[...] += partial


def prepare_linear_params(weight, bias, *, compute_dtype=jnp.float32):
    """One-time parameter packing (hoisted out of the forward hot path).

    weight: [tag_size, embed_dim] (PyTorch nn.Linear layout)
    bias:   [tag_size]
    Returns (w_packed [Kp, Np] compute_dtype, b_packed [1, Np] float32) where
    Kp = round_up(embed_dim, 128), Np = round_up(tag_size, 128).
    """
    T, D = weight.shape
    Kp = _round_up(D, 128)
    Np = _round_up(T, 128)
    w_t = jnp.asarray(weight, jnp.float32).T                    # [D, T]
    w_packed = jnp.pad(w_t, ((0, Kp - D), (0, Np - T))).astype(compute_dtype)
    b_packed = jnp.pad(jnp.asarray(bias, jnp.float32), (0, Np - T)).reshape(1, Np)
    return w_packed, b_packed


@functools.partial(
    jax.jit, static_argnames=("tag_size", "compute_dtype", "force_pallas")
)
def linear_classifier_forward(x, w_packed, b_packed, *, tag_size,
                              compute_dtype=jnp.float32, force_pallas=False):
    """Forward pass of LinearClassifier: logits = x @ weight.T + bias.

    x:        [batch, embed_dim] float32 activations
    w_packed: [Kp, Np] packed/transposed weight from prepare_linear_params
    b_packed: [1, Np]  packed bias from prepare_linear_params
    """
    B, D = x.shape
    Kp, Np = w_packed.shape
    T = tag_size

    # Small-shape fast path: the fixed pallas_call / pad overhead dominates
    # tiny probe problems; XLA's fused dot is strictly faster there.
    if not force_pallas and B * Kp * Np < (1 << 20):
        logits = (x.astype(jnp.float32)
                  @ w_packed[:D, :T].astype(jnp.float32)) + b_packed[0, :T]
        return logits

    cdt = jnp.dtype(compute_dtype)
    sublane = 16 if cdt == jnp.dtype(jnp.bfloat16) else 8
    in_bytes = cdt.itemsize

    Mp = _round_up(B, sublane)
    x_c = x.astype(compute_dtype)
    if Mp != B or Kp != D:
        x_c = jnp.pad(x_c, ((0, Mp - B), (0, Kp - D)))

    budget = _vmem_budget_bytes()
    tm, tn, tk = _select_tiles(Mp, Np, Kp, in_bytes, sublane, budget)
    grid = (Mp // tm, Np // tn, Kp // tk)

    out_padded = pl.pallas_call(
        linear_kernel,
        out_shape=jax.ShapeDtypeStruct((Mp, Np), jnp.float32),
        grid_spec=pltpu.PrefetchScalarGridSpec(
            num_scalar_prefetch=0,
            grid=grid,
            in_specs=[
                pl.BlockSpec((tm, tk), lambda i, j, k: (i, k)),   # x
                pl.BlockSpec((tk, tn), lambda i, j, k: (k, j)),   # weight.T (packed)
                pl.BlockSpec((1, tn), lambda i, j, k: (0, j)),    # bias
            ],
            out_specs=pl.BlockSpec((tm, tn), lambda i, j, k: (i, j)),
        ),
        compiler_params=pltpu.CompilerParams(
            dimension_semantics=("parallel", "parallel", "arbitrary"),
            vmem_limit_bytes=budget,
        ),
    )(x_c, w_packed, b_packed)

    return out_padded[:B, :T]


if __name__ == "__main__":
    key = jax.random.PRNGKey(0)

    def run_case(batch, embed_dim, tag_size, compute_dtype, case_key, atol, rtol):
        kx, kw, kb = jax.random.split(case_key, 3)
        # Deterministic example "embeddings" passed to forward.
        x = jax.random.normal(kx, (batch, embed_dim), dtype=jnp.float32)
        # Parameter init mirroring torch.nn.Linear: U(-1/sqrt(D), 1/sqrt(D)).
        bound = 1.0 / (embed_dim ** 0.5)
        weight = jax.random.uniform(kw, (tag_size, embed_dim), jnp.float32,
                                    -bound, bound)
        bias = jax.random.uniform(kb, (tag_size,), jnp.float32, -bound, bound)

        # One-time packing (hoisted out of the hot path), then the forward.
        w_packed, b_packed = prepare_linear_params(
            weight, bias, compute_dtype=compute_dtype)
        logits = linear_classifier_forward(
            x, w_packed, b_packed, tag_size=tag_size,
            compute_dtype=compute_dtype, force_pallas=True)
        logits = jax.block_until_ready(logits)

        ref = x @ weight.T + bias
        assert logits.shape == (batch, tag_size)
        assert jnp.allclose(logits, ref, atol=atol, rtol=rtol), (
            f"mismatch for case B={batch} D={embed_dim} T={tag_size} "
            f"dtype={compute_dtype}")
        return logits

    k1, k2, k3 = jax.random.split(key, 3)
    # Small shape matching the module's probe-classifier usage.
    run_case(8, 32, 8, jnp.float32, k1, 1e-5, 1e-5)
    # Moderate shape exercising multi-block M tiling and whole-K blocks.
    run_case(256, 768, 130, jnp.float32, k2, 1e-4, 1e-4)
    # Opt-in bf16 MXU path (f32 accumulation); looser tolerance.
    run_case(256, 768, 130, jnp.bfloat16, k3, 1e-1, 1e-1)

    print("KERNEL_OK")
</pallas_src>

<mosaic_0001>
module attributes {stable_mosaic.version = 11 : i64} {
  func.func @linear_kernel(%arg0: i32, %arg1: i32, %arg2: i32, %arg3: memref<8x128xf32, #tpu.memory_space<vmem>>, %arg4: memref<128x128xf32, #tpu.memory_space<vmem>>, %arg5: memref<1x128xf32, #tpu.memory_space<vmem>>, %arg6: memref<8x128xf32, #tpu.memory_space<vmem>>) attributes {dimension_semantics = [#tpu.dimension_semantics<parallel>, #tpu.dimension_semantics<parallel>, #tpu.dimension_semantics<arbitrary>], iteration_bounds = array<i64: 1, 1, 1>, scalar_prefetch = 0 : i64, scratch_operands = 0 : i64, tpu.core_type = #tpu.core_type<tc>, window_params = [{transform_indices = @transform_0, window_bounds = array<i64: 8, 128>}, {transform_indices = @transform_1, window_bounds = array<i64: 128, 128>}, {transform_indices = @transform_2, window_bounds = array<i64: 1, 128>}, {transform_indices = @transform_3, window_bounds = array<i64: 8, 128>}]} {
    %c0 = arith.constant 0 : index
    %c0_0 = arith.constant 0 : index
    %0 = vector.load %arg3[%c0, %c0_0] : memref<8x128xf32, #tpu.memory_space<vmem>>, vector<8x128xf32>
    %c0_1 = arith.constant 0 : index
    %c0_2 = arith.constant 0 : index
    %1 = vector.load %arg4[%c0_1, %c0_2] : memref<128x128xf32, #tpu.memory_space<vmem>>, vector<128x128xf32>
    %cst = arith.constant dense<0.000000e+00> : vector<8x128xf32>
    %2 = tpu.matmul %0, %1, %cst {dimension_numbers = #tpu.dot_dimension_numbers<[1], [0], [0], [1], [0, 0, 1, 1], [], []>} : vector<8x128xf32>, vector<128x128xf32>, vector<8x128xf32> -> vector<8x128xf32>
    %c0_i32 = arith.constant 0 : i32
    %3 = arith.cmpi eq, %arg2, %c0_i32 : i32
    %4 = arith.extui %3 : i1 to i32
    %c0_i32_3 = arith.constant 0 : i32
    %5 = arith.cmpi ne, %4, %c0_i32_3 : i32
    scf.if %5 {
      %c0_6 = arith.constant 0 : index
      %c0_7 = arith.constant 0 : index
      %9 = vector.load %arg5[%c0_6, %c0_7] : memref<1x128xf32, #tpu.memory_space<vmem>>, vector<1x128xf32>
      %10 = vector.broadcast %9 : vector<1x128xf32> to vector<8x128xf32>
      %11 = arith.addf %10, %2 : vector<8x128xf32>
      %c0_8 = arith.constant 0 : index
      %c0_9 = arith.constant 0 : index
      %12 = vector.load %arg6[%c0_8, %c0_9] : memref<8x128xf32, #tpu.memory_space<vmem>>, vector<8x128xf32>
      tpu.vector_store %arg6[%c0_8, %c0_9], %11 {strides = array<i32>} : memref<8x128xf32, #tpu.memory_space<vmem>>, vector<8x128xf32>,
    } else {
    }
    %c0_i32_4 = arith.constant 0 : i32
    %6 = arith.cmpi ne, %arg2, %c0_i32_4 : i32
    %7 = arith.extui %6 : i1 to i32
    %c0_i32_5 = arith.constant 0 : i32
    %8 = arith.cmpi ne, %7, %c0_i32_5 : i32
    scf.if %8 {
      %c0_6 = arith.constant 0 : index
      %c0_7 = arith.constant 0 : index
      %9 = vector.load %arg6[%c0_6, %c0_7] : memref<8x128xf32, #tpu.memory_space<vmem>>, vector<8x128xf32>
      %10 = arith.addf %9, %2 : vector<8x128xf32>
      %c0_8 = arith.constant 0 : index
      %c0_9 = arith.constant 0 : index
      %11 = vector.load %arg6[%c0_8, %c0_9] : memref<8x128xf32, #tpu.memory_space<vmem>>, vector<8x128xf32>
      tpu.vector_store %arg6[%c0_8, %c0_9], %10 {strides = array<i32>} : memref<8x128xf32, #tpu.memory_space<vmem>>, vector<8x128xf32>,
    } else {
    }
    return
  }
  func.func @transform_0(%arg0: i32, %arg1: i32, %arg2: i32) -> (i32, i32) {
    %c0_i32 = arith.constant 0 : i32
    return %arg0, %arg2 : i32, i32
  }
  func.func @transform_1(%arg0: i32, %arg1: i32, %arg2: i32) -> (i32, i32) {
    %c0_i32 = arith.constant 0 : i32
    return %arg2, %arg1 : i32, i32
  }
  func.func @transform_2(%arg0: i32, %arg1: i32, %arg2: i32) -> (i32, i32) {
    %c0_i32 = arith.constant 0 : i32
    %c0_i32_0 = arith.constant 0 : i32
    return %c0_i32, %arg1 : i32, i32
  }
  func.func @transform_3(%arg0: i32, %arg1: i32, %arg2: i32) -> (i32, i32) {
    %c0_i32 = arith.constant 0 : i32
    return %arg0, %arg1 : i32, i32
  }
}

</mosaic_0001>

<llo_original>
// kernel: linear_classifier_forward.1
$region0: #{linear_classifier_forward.1}
  #allocation0 [shape = 'u32[]', space=smem, size = 0x4, offset = 0x4, fixed_abs, tag = 'smem constant byte address 0x4 - core index']
  #allocation1 [shape = 'u32[144,128]{1,0:T(1,128)}', space=vmem, size = 0x12000, scoped, tag = 'internal scratch']
  %s0 = inlined_call_operand.vmem [shape: f32[8,128], index: 0, kind: input, shape index: {}]
  %s1 = inlined_call_operand.hbm [shape: f32[128,128], index: 1, kind: input, shape index: {}]
  %s2 = inlined_call_operand.vmem [shape: f32[1,128], index: 2, kind: input, shape index: {}]
  %s3 = inlined_call_operand.hbm [shape: f32[8,128], index: 3, kind: output, shape index: {}]
  %s4 = sld [smem:[#allocation0]]
  $region34: #{linear_classifier_forward.1} parent=0
    _
  %s6 = ssub.s32 1, %s4
  %s7 = scalar_select 0, %s6, %s4
  $region1: #{linear_classifier_forward.1} parent=0
    #allocation2 [shape = 'u8[65536]{0}', space=vmem, size = 0x10000, scoped, tag = 'input window, operand 1, single buffered']
    #allocation3 [shape = 's32[1]{0}', space=sflag, size = 0x4, scoped, tag = 'scoped memory for linear_classifier_forward.1']
    #allocation4 [shape = 's32[1]{0}', space=sflag, size = 0x4, scoped, tag = 'scoped memory for linear_classifier_forward.1']
    #allocation5 [shape = 'u8[4096]{0}', space=vmem, size = 0x1000, scoped, tag = 'output window, operand 0, single buffered']
    %8 = vsyncpa [#allocation3], 0
    %9 = vsyncpa [#allocation4], 0
    // Predicated region
    $region2: #{linear_classifier_forward.1} parent=1 // pred_check
      _
    $region3: #{linear_classifier_forward.1} parent=1 // pred_check_branch
      %11 = sbr.rel (0) target = $region5
    $region4: #{linear_classifier_forward.1} parent=1 // pred_region
      _
    $region5: #{linear_classifier_forward.1} parent=1 // pred_fallthru
      _
    // Predicated region
    $region6: #{linear_classifier_forward.1} parent=1 // pred_check
      _
    $region7: #{linear_classifier_forward.1} parent=1 // pred_check_branch
      %13 = sbr.rel (0) target = $region9
    $region8: #{linear_classifier_forward.1} parent=1 // pred_region
      %s15 = ssub.s32 2048, 2048
      %16 = vsyncadd [#allocation3], %s15
      %s17 = sshll.u32 [#allocation2], 4
      %s18 = int_to_ptr.vmem [resolvable:$true] %s17
      %23 = dma.hbm_to_vmem [thread:$0]  %s1, 2048, %s18, [#allocation3], 128, 128, 8
    $region9: #{linear_classifier_forward.1} parent=1 // pred_fallthru
      _
    // Predicated region
    $region10: #{linear_classifier_forward.1} parent=1 // pred_check
      _
    $region11: #{linear_classifier_forward.1} parent=1 // pred_check_branch
      %25 = sbr.rel (0) target = $region13
    $region12: #{linear_classifier_forward.1} parent=1 // pred_region
      _
    $region13: #{linear_classifier_forward.1} parent=1 // pred_fallthru
      _
    // Predicated region
    $region14: #{linear_classifier_forward.1} parent=1 // pred_check
      _
    $region15: #{linear_classifier_forward.1} parent=1 // pred_check_branch
      %27 = sbr.rel (0) target = $region17
    $region16: #{linear_classifier_forward.1} parent=1 // pred_region
      %28 = dma.done [#allocation3], 2048
    $region17: #{linear_classifier_forward.1} parent=1 // pred_fallthru
      _
    %v29 = vld [vmem:[%s0] sm:$0xff]
    %v30 = vld [vmem:[#allocation2] sm:$0xff]
    %v31 = vld [vmem:[#allocation2 + $0x8] sm:$0xff]
    %v32 = vld [vmem:[#allocation2 + $0x10] sm:$0xff]
    %v33 = vld [vmem:[#allocation2 + $0x18] sm:$0xff]
    %v34 = vld [vmem:[#allocation2 + $0x20] sm:$0xff]
    %v35 = vld [vmem:[#allocation2 + $0x28] sm:$0xff]
    %v36 = vld [vmem:[#allocation2 + $0x30] sm:$0xff]
    %v37 = vld [vmem:[#allocation2 + $0x38] sm:$0xff]
    %v38 = vld [vmem:[#allocation2 + $0x40] sm:$0xff]
    %v39 = vld [vmem:[#allocation2 + $0x48] sm:$0xff]
    %v40 = vld [vmem:[#allocation2 + $0x50] sm:$0xff]
    %v41 = vld [vmem:[#allocation2 + $0x58] sm:$0xff]
    %v42 = vld [vmem:[#allocation2 + $0x60] sm:$0xff]
    %v43 = vld [vmem:[#allocation2 + $0x68] sm:$0xff]
    %v44 = vld [vmem:[#allocation2 + $0x70] sm:$0xff]
    %v45 = vld [vmem:[#allocation2 + $0x78] sm:$0xff]
    %46 = vmatprep.subr.mxu0 0.0
    %47 = vmatpush1.msra.mxu0 %v30
    %48 = vmatprep.subr.mxu0 0.0
    %49 = vmatpush1.msra.mxu0 %v31
    %50 = vmatprep.subr.mxu0 0.0
    %51 = vmatpush1.msra.mxu0 %v32
    %52 = vmatprep.subr.mxu0 0.0
    %53 = vmatpush1.msra.mxu0 %v33
    %54 = vmatprep.subr.mxu0 0.0
    %55 = vmatpush1.msra.mxu0 %v34
    %56 = vmatprep.subr.mxu0 0.0
    %57 = vmatpush1.msra.mxu0 %v35
    %58 = vmatprep.subr.mxu0 0.0
    %59 = vmatpush1.msra.mxu0 %v36
    %60 = vmatprep.subr.mxu0 0.0
    %61 = vmatpush1.msra.mxu0 %v37
    %62 = vmatprep.subr.mxu0 0.0
    %63 = vmatpush1.msra.mxu0 %v38
    %64 = vmatprep.subr.mxu0 0.0
    %65 = vmatpush1.msra.mxu0 %v39
    %66 = vmatprep.subr.mxu0 0.0
    %67 = vmatpush1.msra.mxu0 %v40
    %68 = vmatprep.subr.mxu0 0.0
    %69 = vmatpush1.msra.mxu0 %v41
    %70 = vmatprep.subr.mxu0 0.0
    %71 = vmatpush1.msra.mxu0 %v42
    %72 = vmatprep.subr.mxu0 0.0
    %73 = vmatpush1.msra.mxu0 %v43
    %74 = vmatprep.subr.mxu0 0.0
    %75 = vmatpush1.msra.mxu0 %v44
    %76 = vmatprep.subr.mxu0 0.0
    %77 = vmatpush1.msra.mxu0 %v45
    %78 = vmatprep.subr.mxu0 0.0
    %79 = vmatpush1.msra.mxu0 0.0
    %80 = vmatprep.subr.mxu0 0.0
    %81 = vmatpush1.msra.mxu0 0.0
    %82 = vmatprep.subr.mxu0 0.0
    %83 = vmatpush1.msra.mxu0 0.0
    %84 = vmatprep.subr.mxu0 0.0
    %85 = vmatpush1.msra.mxu0 0.0
    %86 = vmatprep.subr.mxu0 0.0
    %87 = vmatpush1.msra.mxu0 0.0
    %88 = vmatprep.subr.mxu0 0.0
    %89 = vmatpush1.msra.mxu0 0.0
    %90 = vmatprep.subr.mxu0 0.0
    %91 = vmatpush1.msra.mxu0 0.0
    %92 = vmatprep.subr.mxu0 0.0
    %93 = vmatpush1.msra.mxu0 0.0
    %94 = vmatprep.subr.mxu0 0.0
    %95 = vmatpush1.msra.mxu0 0.0
    %96 = vmatprep.subr.mxu0 0.0
    %97 = vmatpush1.msra.mxu0 0.0
    %98 = vmatprep.subr.mxu0 0.0
    %99 = vmatpush1.msra.mxu0 0.0
    %100 = vmatprep.subr.mxu0 0.0
    %101 = vmatpush1.msra.mxu0 0.0
    %102 = vmatprep.subr.mxu0 0.0
    %103 = vmatpush1.msra.mxu0 0.0
    %104 = vmatprep.subr.mxu0 0.0
    %105 = vmatpush1.msra.mxu0 0.0
    %106 = vmatprep.subr.mxu0 0.0
    %107 = vmatpush1.msra.mxu0 0.0
    %108 = vmatprep.subr.mxu0 0.0
    %109 = vmatpush1.msra.mxu0 0.0
    %110 = vmatprep.mubr.f32.mxu0 0.0
    %111 = vmatmul.mubr.f32.gmra.mrb[0].mxu0 %v29
    %v112 = vpop.f32.mrb[0].mxu0
    %v113 = vadd.f32 0.0, %v112
    %v114 = vpop.f32.mrb[0].mxu0
    %115 = vdwg.mxu0
    %p116 = scmp.eq.s32.totalorder 0, 0
    // Predicated region
    $region18: #{linear_classifier_forward.1} parent=1 // pred_check
      %p117 = pneg %p116
    $region19: #{linear_classifier_forward.1} parent=1 // pred_check_branch
      %119 = sbr.rel (%p117) target = $region21
    $region20: #{linear_classifier_forward.1} parent=1 // pred_region
      %v120 = vld [vmem:[%s2] sm:$0x1]
      %v122 = vlaneseq
      %v123 = vshrl.u32 %v122, 7
      %v124 = vsub.s32 0, %v123
      %v125 = vrot.slane %v120, %v124
      %v127 = vadd.f32 %v125, %v113
      %128 = vst [vmem:[#allocation5] sm:$0xff] %v127
    $region21: #{linear_classifier_forward.1} parent=1 // pred_fallthru
      _
    %p129 = scmp.ne.s32.totalorder 0, 0
    // Predicated region
    $region22: #{linear_classifier_forward.1} parent=1 // pred_check
      %p130 = pneg %p129
    $region23: #{linear_classifier_forward.1} parent=1 // pred_check_branch
      %132 = sbr.rel (%p130) target = $region25
    $region24: #{linear_classifier_forward.1} parent=1 // pred_region
      %v133 = vld [vmem:[#allocation5] sm:$0xff]
      %v134 = vadd.f32 %v133, %v113
      %135 = vst [vmem:[#allocation5] sm:$0xff] %v134
    $region25: #{linear_classifier_forward.1} parent=1 // pred_fallthru
      _
    // Predicated region
    $region26: #{linear_classifier_forward.1} parent=1 // pred_check
      _
    $region27: #{linear_classifier_forward.1} parent=1 // pred_check_branch
      %137 = sbr.rel (0) target = $region29
    $region28: #{linear_classifier_forward.1} parent=1 // pred_region
      %s139 = ssub.s32 128, 128
      %140 = vsyncadd [#allocation4], %s139
      %s142 = sshll.u32 [#allocation5], 4
      %s143 = int_to_ptr.vmem [resolvable:$true] %s142
      %145 = dma.vmem_to_hbm [thread:$0]  %s143, 128, %s3, [#allocation4]
    $region29: #{linear_classifier_forward.1} parent=1 // pred_fallthru
      _
    // Predicated region
    $region30: #{linear_classifier_forward.1} parent=1 // pred_check
      _
    $region31: #{linear_classifier_forward.1} parent=1 // pred_check_branch
      %147 = sbr.rel (0) target = $region33
    $region32: #{linear_classifier_forward.1} parent=1 // pred_region
      %148 = dma.done [#allocation4], 128
    $region33: #{linear_classifier_forward.1} parent=1 // pred_fallthru
      _
    %149 = vsyncpa [#allocation3], 1
    %150 = vsyncpa [#allocation4], 1

</llo_original>
